<compile_context>
chip_gen: v5e
topology: v5e:2x2
jax: 0.10.0
libtpu: 0.0.40
codegen_flags: <defaults>
</compile_context>

<pallas_src>
import jax
import jax.numpy as jnp
from jax.experimental import pallas as pl
from jax.experimental.pallas import tpu as pltpu

FEATURE_DIM = 32      # F
SI_DIM = 512          # scale_interaction output width (triggers scale_projection)
LN_EPS = 1e-5
MAX_TILE_T = 8192     # per-step token tile (folded kernel: ~16-20 MiB worst case VMEM)


def _round_up(x, m):
    return ((x + m - 1) // m) * m


def _apo_kernel(dist_ref, params_ref,        # (TILE_T, F) each
                w_top_ref, w_bot_ref,        # (F, 2F) each: [concat(W_sc, w1)] split by input
                b_comb_ref,                  # (1, 2F): concat(b_sc, b1)
                gamma_ref, beta_ref,         # LayerNorm(F)
                w2_ref, b2_ref,              # param_predictor[3]: Linear(F, F)
                opt_ref, sw_ref):            # (TILE_T, F) outputs
    f = FEATURE_DIM
    dist = dist_ref[...].astype(jnp.float32)
    params = params_ref[...].astype(jnp.float32)

    # One merged MXU pass: columns [:F] = folded scale chain, [F:] = predictor Linear 1.
    y = (jnp.dot(dist, w_top_ref[...], preferred_element_type=jnp.float32)
         + jnp.dot(params, w_bot_ref[...], preferred_element_type=jnp.float32)
         + b_comb_ref[...])                                  # (T, 2F)
    sw = y[:, :f]                                            # scale_weights (T, F)
    h = y[:, f:]                                             # predictor hidden (T, F)

    # LayerNorm over the feature axis (biased variance, eps inside rsqrt)
    mean = jnp.mean(h, axis=-1, keepdims=True)
    var = jnp.mean((h - mean) * (h - mean), axis=-1, keepdims=True)
    h = (h - mean) * jax.lax.rsqrt(var + LN_EPS)
    h = h * gamma_ref[...] + beta_ref[...]
    # exact (erf-based) GELU, matching nn.GELU() default
    h = 0.5 * h * (1.0 + jax.lax.erf(h * jnp.float32(0.7071067811865476)))
    pu = (jnp.dot(h, w2_ref[...], preferred_element_type=jnp.float32)
          + b2_ref[...])                                     # (T, F)

    # optimized_params = current_params + scale_weights * param_update
    opt_ref[...] = (params + sw * pu).astype(opt_ref.dtype)
    sw_ref[...] = sw.astype(sw_ref.dtype)


def adaptive_parameter_optimizer(distribution, current_params, weights,
                                 max_tile_t=MAX_TILE_T):
    """distribution, current_params: (..., F).  Returns (optimized_params, scale_weights)."""
    orig_shape = current_params.shape
    f = orig_shape[-1]
    dist2d = distribution.reshape(-1, f).astype(jnp.float32)      # free reshape, no HBM pass
    params2d = current_params.reshape(-1, f).astype(jnp.float32)
    t = params2d.shape[0]

    (w_si, b_si, w_sp, b_sp, w1, b1, gamma, beta, w2, b2) = weights

    # Algebraic fold of the linear->linear scale chain (no nonlinearity in between).
    w_sc = jnp.dot(w_si, w_sp)                      # (2F, F)
    b_sc = jnp.dot(b_si, w_sp) + b_sp               # (1, F)
    # Merge with the predictor's first Linear (shared LHS) and split by input stream.
    w_comb = jnp.concatenate([w_sc, w1], axis=1)    # (2F, 2F)
    b_comb = jnp.concatenate([b_sc, b1], axis=1)    # (1, 2F)
    w_top = w_comb[:f]                              # (F, 2F)  — multiplies distribution
    w_bot = w_comb[f:]                              # (F, 2F)  — multiplies current_params

    # Token tile: multiple of 8, capped.  No padding: cdiv grid + masked partial tail.
    tile_t = min(max_tile_t, _round_up(t, 8))
    grid = (pl.cdiv(t, tile_t),)

    def resident_spec(shape):
        return pl.BlockSpec(shape, lambda i: (0, 0))

    tok_spec = pl.BlockSpec((tile_t, f), lambda i: (i, 0))

    weight_args = (w_top, w_bot, b_comb, gamma, beta, w2, b2)
    in_specs = [tok_spec, tok_spec] + [resident_spec(w.shape) for w in weight_args]

    opt2d, sw2d = pl.pallas_call(
        _apo_kernel,
        grid=grid,
        in_specs=in_specs,
        out_specs=(tok_spec, tok_spec),
        out_shape=(jax.ShapeDtypeStruct((t, f), jnp.float32),
                   jax.ShapeDtypeStruct((t, f), jnp.float32)),
        compiler_params=pltpu.CompilerParams(
            dimension_semantics=("parallel",),
            vmem_limit_bytes=32 * 1024 * 1024),
    )(dist2d, params2d, *weight_args)

    return opt2d.reshape(orig_shape), sw2d.reshape(orig_shape)


def _reference(distribution, current_params, weights):
    """Pure-JAX reference of the same forward, unfused (for verification)."""
    (w_si, b_si, w_sp, b_sp, w1, b1, gamma, beta, w2, b2) = weights
    concat = jnp.concatenate([distribution, current_params], axis=-1)
    sw = jnp.dot(jnp.dot(concat, w_si) + b_si, w_sp) + b_sp
    h = jnp.dot(concat, w1) + b1
    mean = jnp.mean(h, axis=-1, keepdims=True)
    var = jnp.mean((h - mean) ** 2, axis=-1, keepdims=True)
    h = (h - mean) * jax.lax.rsqrt(var + LN_EPS)
    h = h * gamma + beta
    h = 0.5 * h * (1.0 + jax.lax.erf(h / jnp.sqrt(2.0)))
    pu = jnp.dot(h, w2) + b2
    return current_params + sw * pu, sw


def make_weights(key, f=FEATURE_DIM, si=SI_DIM):
    ks = jax.random.split(key, 6)
    scale = 0.05
    w_si = scale * jax.random.normal(ks[0], (2 * f, si), jnp.float32)
    b_si = scale * jax.random.normal(ks[1], (1, si), jnp.float32)
    w_sp = scale * jax.random.normal(ks[2], (si, f), jnp.float32)
    b_sp = scale * jax.random.normal(ks[3], (1, f), jnp.float32)
    w1 = scale * jax.random.normal(ks[4], (2 * f, f), jnp.float32)
    b1 = jnp.zeros((1, f), jnp.float32)
    gamma = jnp.ones((1, f), jnp.float32)
    beta = jnp.zeros((1, f), jnp.float32)
    w2 = scale * jax.random.normal(ks[5], (f, f), jnp.float32)
    b2 = jnp.zeros((1, f), jnp.float32)
    return (w_si, b_si, w_sp, b_sp, w1, b1, gamma, beta, w2, b2)


if __name__ == "__main__":
    key = jax.random.PRNGKey(0)
    k_d, k_p, k_w = jax.random.split(key, 3)

    batch, seq, f = 2, 8, FEATURE_DIM
    distribution = jax.random.normal(k_d, (batch, seq, f), jnp.float32)
    current_params = jax.random.normal(k_p, (batch, seq, f), jnp.float32)
    weights = make_weights(k_w)

    opt_params, scale_w = adaptive_parameter_optimizer(distribution, current_params, weights)
    opt_params = jax.block_until_ready(opt_params)
    scale_w = jax.block_until_ready(scale_w)

    ref_params, ref_sw = _reference(distribution, current_params, weights)
    assert opt_params.shape == current_params.shape
    assert scale_w.shape == current_params.shape
    assert jnp.allclose(opt_params, ref_params, rtol=1e-4, atol=1e-4)
    assert jnp.allclose(scale_w, ref_sw, rtol=1e-4, atol=1e-4)

    # Also exercise the non-8-multiple / partial-tail-block path with a larger token count.
    kb_d, kb_p = jax.random.split(k_d)
    big_dist = jax.random.normal(kb_d, (3, 700, f), jnp.float32)
    big_params = jax.random.normal(kb_p, (3, 700, f), jnp.float32)
    big_opt, big_sw = adaptive_parameter_optimizer(big_dist, big_params, weights)
    big_opt = jax.block_until_ready(big_opt)
    big_sw = jax.block_until_ready(big_sw)
    ref_big_opt, ref_big_sw = _reference(big_dist, big_params, weights)
    assert jnp.allclose(big_opt, ref_big_opt, rtol=1e-4, atol=1e-4)
    assert jnp.allclose(big_sw, ref_big_sw, rtol=1e-4, atol=1e-4)

    print("KERNEL_OK")
</pallas_src>

<mosaic_0001>
module attributes {stable_mosaic.version = 11 : i64} {
  func.func @_apo_kernel(%arg0: i32, %arg1: memref<16x32xf32, #tpu.memory_space<vmem>>, %arg2: memref<16x32xf32, #tpu.memory_space<vmem>>, %arg3: memref<32x64xf32, #tpu.memory_space<vmem>>, %arg4: memref<32x64xf32, #tpu.memory_space<vmem>>, %arg5: memref<1x64xf32, #tpu.memory_space<vmem>>, %arg6: memref<1x32xf32, #tpu.memory_space<vmem>>, %arg7: memref<1x32xf32, #tpu.memory_space<vmem>>, %arg8: memref<32x32xf32, #tpu.memory_space<vmem>>, %arg9: memref<1x32xf32, #tpu.memory_space<vmem>>, %arg10: memref<16x32xf32, #tpu.memory_space<vmem>>, %arg11: memref<16x32xf32, #tpu.memory_space<vmem>>) attributes {dimension_semantics = [#tpu.dimension_semantics<parallel>], iteration_bounds = array<i64: 1>, scalar_prefetch = 0 : i64, scratch_operands = 0 : i64, tpu.core_type = #tpu.core_type<tc>, window_params = [{transform_indices = @transform_0, window_bounds = array<i64: 16, 32>}, {transform_indices = @transform_1, window_bounds = array<i64: 16, 32>}, {pipeline_mode = #tpu.pipeline_mode<synchronous>, transform_indices = @transform_2, window_bounds = array<i64: 32, 64>}, {pipeline_mode = #tpu.pipeline_mode<synchronous>, transform_indices = @transform_3, window_bounds = array<i64: 32, 64>}, {pipeline_mode = #tpu.pipeline_mode<synchronous>, transform_indices = @transform_4, window_bounds = array<i64: 1, 64>}, {pipeline_mode = #tpu.pipeline_mode<synchronous>, transform_indices = @transform_5, window_bounds = array<i64: 1, 32>}, {pipeline_mode = #tpu.pipeline_mode<synchronous>, transform_indices = @transform_6, window_bounds = array<i64: 1, 32>}, {pipeline_mode = #tpu.pipeline_mode<synchronous>, transform_indices = @transform_7, window_bounds = array<i64: 32, 32>}, {pipeline_mode = #tpu.pipeline_mode<synchronous>, transform_indices = @transform_8, window_bounds = array<i64: 1, 32>}, {transform_indices = @transform_9, window_bounds = array<i64: 16, 32>}, {transform_indices = @transform_10, window_bounds = array<i64: 16, 32>}]} {
    %c0 = arith.constant 0 : index
    %c0_0 = arith.constant 0 : index
    %0 = vector.load %arg1[%c0, %c0_0] : memref<16x32xf32, #tpu.memory_space<vmem>>, vector<16x32xf32>
    %c0_1 = arith.constant 0 : index
    %c0_2 = arith.constant 0 : index
    %1 = vector.load %arg2[%c0_1, %c0_2] : memref<16x32xf32, #tpu.memory_space<vmem>>, vector<16x32xf32>
    %c0_3 = arith.constant 0 : index
    %c0_4 = arith.constant 0 : index
    %2 = vector.load %arg3[%c0_3, %c0_4] : memref<32x64xf32, #tpu.memory_space<vmem>>, vector<32x64xf32>
    %cst = arith.constant dense<0.000000e+00> : vector<16x64xf32>
    %3 = tpu.matmul %0, %2, %cst {dimension_numbers = #tpu.dot_dimension_numbers<[1], [0], [0], [1], [0, 0, 1, 1], [], []>} : vector<16x32xf32>, vector<32x64xf32>, vector<16x64xf32> -> vector<16x64xf32>
    %c0_5 = arith.constant 0 : index
    %c0_6 = arith.constant 0 : index
    %4 = vector.load %arg4[%c0_5, %c0_6] : memref<32x64xf32, #tpu.memory_space<vmem>>, vector<32x64xf32>
    %cst_7 = arith.constant dense<0.000000e+00> : vector<16x64xf32>
    %5 = tpu.matmul %1, %4, %cst_7 {dimension_numbers = #tpu.dot_dimension_numbers<[1], [0], [0], [1], [0, 0, 1, 1], [], []>} : vector<16x32xf32>, vector<32x64xf32>, vector<16x64xf32> -> vector<16x64xf32>
    %6 = arith.addf %3, %5 : vector<16x64xf32>
    %c0_8 = arith.constant 0 : index
    %c0_9 = arith.constant 0 : index
    %7 = vector.load %arg5[%c0_8, %c0_9] : memref<1x64xf32, #tpu.memory_space<vmem>>, vector<1x64xf32>
    %8 = vector.broadcast %7 : vector<1x64xf32> to vector<16x64xf32>
    %9 = arith.addf %6, %8 : vector<16x64xf32>
    %10 = vector.extract_strided_slice %9 {offsets = [0, 0], sizes = [16, 32], strides = [1, 1]} : vector<16x64xf32> to vector<16x32xf32>
    %11 = vector.extract_strided_slice %9 {offsets = [0, 32], sizes = [16, 32], strides = [1, 1]} : vector<16x64xf32> to vector<16x32xf32>
    %cst_10 = arith.constant dense<0.000000e+00> : vector<16xf32>
    %12 = vector.multi_reduction <add>, %11, %cst_10 [1] : vector<16x32xf32> to vector<16xf32>
    %13 = vector.shape_cast %12 : vector<16xf32> to vector<16x1xf32>
    %cst_11 = arith.constant 3.200000e+01 : f32
    %14 = vector.broadcast %cst_11 : f32 to vector<16x1xf32>
    %15 = arith.divf %13, %14 : vector<16x1xf32>
    %16 = vector.broadcast %15 : vector<16x1xf32> to vector<16x32xf32>
    %17 = arith.subf %11, %16 : vector<16x32xf32>
    %18 = vector.broadcast %15 : vector<16x1xf32> to vector<16x32xf32>
    %19 = arith.subf %11, %18 : vector<16x32xf32>
    %20 = arith.mulf %17, %19 : vector<16x32xf32>
    %cst_12 = arith.constant dense<0.000000e+00> : vector<16xf32>
    %21 = vector.multi_reduction <add>, %20, %cst_12 [1] : vector<16x32xf32> to vector<16xf32>
    %22 = vector.shape_cast %21 : vector<16xf32> to vector<16x1xf32>
    %cst_13 = arith.constant 3.200000e+01 : f32
    %23 = vector.broadcast %cst_13 : f32 to vector<16x1xf32>
    %24 = arith.divf %22, %23 : vector<16x1xf32>
    %25 = vector.broadcast %15 : vector<16x1xf32> to vector<16x32xf32>
    %26 = arith.subf %11, %25 : vector<16x32xf32>
    %cst_14 = arith.constant 9.99999974E-6 : f32
    %27 = vector.broadcast %cst_14 : f32 to vector<16x1xf32>
    %28 = arith.addf %24, %27 : vector<16x1xf32>
    %29 = math.rsqrt %28 : vector<16x1xf32>
    %30 = vector.broadcast %29 : vector<16x1xf32> to vector<16x32xf32>
    %31 = arith.mulf %26, %30 : vector<16x32xf32>
    %c0_15 = arith.constant 0 : index
    %c0_16 = arith.constant 0 : index
    %32 = vector.load %arg6[%c0_15, %c0_16] : memref<1x32xf32, #tpu.memory_space<vmem>>, vector<1x32xf32>
    %33 = vector.broadcast %32 : vector<1x32xf32> to vector<16x32xf32>
    %34 = arith.mulf %31, %33 : vector<16x32xf32>
    %c0_17 = arith.constant 0 : index
    %c0_18 = arith.constant 0 : index
    %35 = vector.load %arg7[%c0_17, %c0_18] : memref<1x32xf32, #tpu.memory_space<vmem>>, vector<1x32xf32>
    %36 = vector.broadcast %35 : vector<1x32xf32> to vector<16x32xf32>
    %37 = arith.addf %34, %36 : vector<16x32xf32>
    %cst_19 = arith.constant 5.000000e-01 : f32
    %38 = vector.broadcast %cst_19 : f32 to vector<16x32xf32>
    %39 = arith.mulf %38, %37 : vector<16x32xf32>
    %cst_20 = arith.constant 0.707106769 : f32
    %40 = vector.broadcast %cst_20 : f32 to vector<16x32xf32>
    %41 = arith.mulf %37, %40 : vector<16x32xf32>
    %42 = math.erf %41 : vector<16x32xf32>
    %cst_21 = arith.constant 1.000000e+00 : f32
    %43 = vector.broadcast %cst_21 : f32 to vector<16x32xf32>
    %44 = arith.addf %43, %42 : vector<16x32xf32>
    %45 = arith.mulf %39, %44 : vector<16x32xf32>
    %c0_22 = arith.constant 0 : index
    %c0_23 = arith.constant 0 : index
    %46 = vector.load %arg8[%c0_22, %c0_23] : memref<32x32xf32, #tpu.memory_space<vmem>>, vector<32x32xf32>
    %cst_24 = arith.constant dense<0.000000e+00> : vector<16x32xf32>
    %47 = tpu.matmul %45, %46, %cst_24 {dimension_numbers = #tpu.dot_dimension_numbers<[1], [0], [0], [1], [0, 0, 1, 1], [], []>} : vector<16x32xf32>, vector<32x32xf32>, vector<16x32xf32> -> vector<16x32xf32>
    %c0_25 = arith.constant 0 : index
    %c0_26 = arith.constant 0 : index
    %48 = vector.load %arg9[%c0_25, %c0_26] : memref<1x32xf32, #tpu.memory_space<vmem>>, vector<1x32xf32>
    %49 = vector.broadcast %48 : vector<1x32xf32> to vector<16x32xf32>
    %50 = arith.addf %47, %49 : vector<16x32xf32>
    %51 = arith.mulf %10, %50 : vector<16x32xf32>
    %52 = arith.addf %1, %51 : vector<16x32xf32>
    %c0_27 = arith.constant 0 : index
    %c0_28 = arith.constant 0 : index
    %53 = vector.load %arg10[%c0_27, %c0_28] : memref<16x32xf32, #tpu.memory_space<vmem>>, vector<16x32xf32>
    tpu.vector_store %arg10[%c0_27, %c0_28], %52 {strides = array<i32>} : memref<16x32xf32, #tpu.memory_space<vmem>>, vector<16x32xf32>,
    %c0_29 = arith.constant 0 : index
    %c0_30 = arith.constant 0 : index
    %54 = vector.load %arg11[%c0_29, %c0_30] : memref<16x32xf32, #tpu.memory_space<vmem>>, vector<16x32xf32>
    tpu.vector_store %arg11[%c0_29, %c0_30], %10 {strides = array<i32>} : memref<16x32xf32, #tpu.memory_space<vmem>>, vector<16x32xf32>,
    return
  }
  func.func @transform_0(%arg0: i32) -> (i32, i32) {
    %c0_i32 = arith.constant 0 : i32
    %c0_i32_0 = arith.constant 0 : i32
    return %arg0, %c0_i32 : i32, i32
  }
  func.func @transform_1(%arg0: i32) -> (i32, i32) {
    %c0_i32 = arith.constant 0 : i32
    %c0_i32_0 = arith.constant 0 : i32
    return %arg0, %c0_i32 : i32, i32
  }
  func.func @transform_2(%arg0: i32) -> (i32, i32) {
    %c0_i32 = arith.constant 0 : i32
    %c0_i32_0 = arith.constant 0 : i32
    %c0_i32_1 = arith.constant 0 : i32
    return %c0_i32, %c0_i32_0 : i32, i32
  }
  func.func @transform_3(%arg0: i32) -> (i32, i32) {
    %c0_i32 = arith.constant 0 : i32
    %c0_i32_0 = arith.constant 0 : i32
    %c0_i32_1 = arith.constant 0 : i32
    return %c0_i32, %c0_i32_0 : i32, i32
  }
  func.func @transform_4(%arg0: i32) -> (i32, i32) {
    %c0_i32 = arith.constant 0 : i32
    %c0_i32_0 = arith.constant 0 : i32
    %c0_i32_1 = arith.constant 0 : i32
    return %c0_i32, %c0_i32_0 : i32, i32
  }
  func.func @transform_5(%arg0: i32) -> (i32, i32) {
    %c0_i32 = arith.constant 0 : i32
    %c0_i32_0 = arith.constant 0 : i32
    %c0_i32_1 = arith.constant 0 : i32
    return %c0_i32, %c0_i32_0 : i32, i32
  }
  func.func @transform_6(%arg0: i32) -> (i32, i32) {
    %c0_i32 = arith.constant 0 : i32
    %c0_i32_0 = arith.constant 0 : i32
    %c0_i32_1 = arith.constant 0 : i32
    return %c0_i32, %c0_i32_0 : i32, i32
  }
  func.func @transform_7(%arg0: i32) -> (i32, i32) {
    %c0_i32 = arith.constant 0 : i32
    %c0_i32_0 = arith.constant 0 : i32
    %c0_i32_1 = arith.constant 0 : i32
    return %c0_i32, %c0_i32_0 : i32, i32
  }
  func.func @transform_8(%arg0: i32) -> (i32, i32) {
    %c0_i32 = arith.constant 0 : i32
    %c0_i32_0 = arith.constant 0 : i32
    %c0_i32_1 = arith.constant 0 : i32
    return %c0_i32, %c0_i32_0 : i32, i32
  }
  func.func @transform_9(%arg0: i32) -> (i32, i32) {
    %c0_i32 = arith.constant 0 : i32
    %c0_i32_0 = arith.constant 0 : i32
    return %arg0, %c0_i32 : i32, i32
  }
  func.func @transform_10(%arg0: i32) -> (i32, i32) {
    %c0_i32 = arith.constant 0 : i32
    %c0_i32_0 = arith.constant 0 : i32
    return %arg0, %c0_i32 : i32, i32
  }
}

</mosaic_0001>

<llo_original>
// kernel: tpu_custom_call.1
$region0: #{tpu_custom_call.1}
  #allocation0 [shape = 'u32[]', space=smem, size = 0x4, offset = 0x4, fixed_abs, tag = 'smem constant byte address 0x4 - core index']
  #allocation1 [shape = 'u32[72,128]{1,0:T(1,128)}', space=vmem, size = 0x9000, scoped, tag = 'internal scratch']
  %s0 = inlined_call_operand.hbm [shape: f32[16,32], index: 0, kind: input, shape index: {}]
  %s1 = inlined_call_operand.hbm [shape: f32[16,32], index: 1, kind: input, shape index: {}]
  %s2 = inlined_call_operand.hbm [shape: f32[32,64], index: 2, kind: input, shape index: {}]
  %s3 = inlined_call_operand.hbm [shape: f32[32,64], index: 3, kind: input, shape index: {}]
  %s4 = inlined_call_operand.vmem [shape: f32[1,64], index: 4, kind: input, shape index: {}]
  %s5 = inlined_call_operand.vmem [shape: f32[1,32], index: 5, kind: input, shape index: {}]
  %s6 = inlined_call_operand.vmem [shape: f32[1,32], index: 6, kind: input, shape index: {}]
  %s7 = inlined_call_operand.hbm [shape: f32[32,32], index: 7, kind: input, shape index: {}]
  %s8 = inlined_call_operand.vmem [shape: f32[1,32], index: 8, kind: input, shape index: {}]
  %s9 = inlined_call_operand.hbm [shape: f32[16,32], index: 9, kind: output, shape index: {0}]
  %s10 = inlined_call_operand.hbm [shape: f32[16,32], index: 10, kind: output, shape index: {1}]
  %11 = xla_tuple %s9, %s10
  %s12 = sld [smem:[#allocation0]]
  $region74: #{tpu_custom_call.1} parent=0
    _
  %s14 = ssub.s32 1, %s12
  %s15 = scalar_select 0, %s14, %s12
  $region1: #{tpu_custom_call.1} parent=0
    #allocation2 [shape = 'u8[8192]{0}', space=vmem, size = 0x2000, scoped, tag = 'input window, operand 0, single buffered']
    #allocation3 [shape = 's32[1]{0}', space=sflag, size = 0x4, scoped, tag = 'scoped memory for tpu_custom_call.1']
    #allocation4 [shape = 's32[1]{0}', space=sflag, size = 0x4, scoped, tag = 'scoped memory for tpu_custom_call.1']
    #allocation5 [shape = 'u8[8192]{0}', space=vmem, size = 0x2000, scoped, tag = 'input window, operand 1, single buffered']
    #allocation6 [shape = 's32[1]{0}', space=sflag, size = 0x4, scoped, tag = 'scoped memory for tpu_custom_call.1']
    #allocation7 [shape = 'u8[16384]{0}', space=vmem, size = 0x4000, scoped, tag = 'input window, operand 2, single buffered']
    #allocation8 [shape = 'u8[16384]{0}', space=vmem, size = 0x4000, scoped, tag = 'input window, operand 3, single buffered']
    #allocation9 [shape = 's32[1]{0}', space=sflag, size = 0x4, scoped, tag = 'scoped memory for tpu_custom_call.1']
    #allocation10 [shape = 'u8[16384]{0}', space=vmem, size = 0x4000, scoped, tag = 'input window, operand 7, single buffered']
    #allocation11 [shape = 'u8[8192]{0}', space=vmem, size = 0x2000, scoped, tag = 'output window, operand 0, single buffered']
    #allocation12 [shape = 'u8[8192]{0}', space=vmem, size = 0x2000, scoped, tag = 'output window, operand 1, single buffered']
    #allocation13 [shape = 's32[1]{0}', space=sflag, size = 0x4, scoped, tag = 'scoped memory for tpu_custom_call.1']
    %16 = vsyncpa [#allocation3], 0
    %17 = vsyncpa [#allocation6], 0
    %18 = vsyncpa [#allocation9], 0
    %19 = vsyncpa [#allocation4], 0
    %20 = vsyncpa [#allocation13], 0
    // Predicated region
    $region2: #{tpu_custom_call.1} parent=1 // pred_check
      _
    $region3: #{tpu_custom_call.1} parent=1 // pred_check_branch
      %22 = sbr.rel (0) target = $region5
    $region4: #{tpu_custom_call.1} parent=1 // pred_region
      %24 = vsyncadd [#allocation3], 0
      %s25 = sshll.u32 %s0, 4
      %s26 = int_to_ptr.hbm [resolvable:$true] %s25
      %s27 = sshll.u32 [#allocation2], 4
      %s28 = int_to_ptr.vmem [resolvable:$true] %s27
      %33 = dma.hbm_to_vmem [thread:$0]  %s26, 256, %s28, [#allocation3], 128, 128, 8
    $region5: #{tpu_custom_call.1} parent=1 // pred_fallthru
      _
    // Predicated region
    $region6: #{tpu_custom_call.1} parent=1 // pred_check
      _
    $region7: #{tpu_custom_call.1} parent=1 // pred_check_branch
      %35 = sbr.rel (0) target = $region9
    $region8: #{tpu_custom_call.1} parent=1 // pred_region
      %37 = vsyncadd [#allocation6], 0
      %s38 = sshll.u32 %s1, 4
      %s39 = int_to_ptr.hbm [resolvable:$true] %s38
      %s40 = sshll.u32 [#allocation5], 4
      %s41 = int_to_ptr.vmem [resolvable:$true] %s40
      %46 = dma.hbm_to_vmem [thread:$0]  %s39, 256, %s41, [#allocation6], 128, 128, 8
    $region9: #{tpu_custom_call.1} parent=1 // pred_fallthru
      _
    // Predicated region
    $region10: #{tpu_custom_call.1} parent=1 // pred_check
      _
    $region11: #{tpu_custom_call.1} parent=1 // pred_check_branch
      %48 = sbr.rel (0) target = $region13
    $region12: #{tpu_custom_call.1} parent=1 // pred_region
      %50 = vsyncadd [#allocation6], 0
      %s51 = sshll.u32 %s2, 4
      %s52 = int_to_ptr.hbm [resolvable:$true] %s51
      %s53 = sshll.u32 [#allocation7], 4
      %s54 = int_to_ptr.vmem [resolvable:$true] %s53
      %59 = dma.hbm_to_vmem [thread:$0]  %s52, 512, %s54, [#allocation6], 128, 128, 8
    $region13: #{tpu_custom_call.1} parent=1 // pred_fallthru
      _
    // Predicated region
    $region14: #{tpu_custom_call.1} parent=1 // pred_check
      _
    $region15: #{tpu_custom_call.1} parent=1 // pred_check_branch
      %61 = sbr.rel (0) target = $region17
    $region16: #{tpu_custom_call.1} parent=1 // pred_region
      %63 = vsyncadd [#allocation9], 0
      %s64 = sshll.u32 %s3, 4
      %s65 = int_to_ptr.hbm [resolvable:$true] %s64
      %s66 = sshll.u32 [#allocation8], 4
      %s67 = int_to_ptr.vmem [resolvable:$true] %s66
      %72 = dma.hbm_to_vmem [thread:$0]  %s65, 512, %s67, [#allocation9], 128, 128, 8
    $region17: #{tpu_custom_call.1} parent=1 // pred_fallthru
      _
    // Predicated region
    $region18: #{tpu_custom_call.1} parent=1 // pred_check
      _
    $region19: #{tpu_custom_call.1} parent=1 // pred_check_branch
      %74 = sbr.rel (0) target = $region21
    $region20: #{tpu_custom_call.1} parent=1 // pred_region
      _
    $region21: #{tpu_custom_call.1} parent=1 // pred_fallthru
      _
    // Predicated region
    $region22: #{tpu_custom_call.1} parent=1 // pred_check
      _
    $region23: #{tpu_custom_call.1} parent=1 // pred_check_branch
      %76 = sbr.rel (0) target = $region25
    $region24: #{tpu_custom_call.1} parent=1 // pred_region
      _
    $region25: #{tpu_custom_call.1} parent=1 // pred_fallthru
      _
    // Predicated region
    $region26: #{tpu_custom_call.1} parent=1 // pred_check
      _
    $region27: #{tpu_custom_call.1} parent=1 // pred_check_branch
      %78 = sbr.rel (0) target = $region29
    $region28: #{tpu_custom_call.1} parent=1 // pred_region
      _
    $region29: #{tpu_custom_call.1} parent=1 // pred_fallthru
      _
    // Predicated region
    $region30: #{tpu_custom_call.1} parent=1 // pred_check
      _
    $region31: #{tpu_custom_call.1} parent=1 // pred_check_branch
      %80 = sbr.rel (0) target = $region33
    $region32: #{tpu_custom_call.1} parent=1 // pred_region
      %82 = vsyncadd [#allocation9], 0
      %s83 = sshll.u32 %s7, 4
      %s84 = int_to_ptr.hbm [resolvable:$true] %s83
      %s85 = sshll.u32 [#allocation10], 4
      %s86 = int_to_ptr.vmem [resolvable:$true] %s85
      %91 = dma.hbm_to_vmem [thread:$0]  %s84, 512, %s86, [#allocation9], 128, 128, 8
    $region33: #{tpu_custom_call.1} parent=1 // pred_fallthru
      _
    // Predicated region
    $region34: #{tpu_custom_call.1} parent=1 // pred_check
      _
    $region35: #{tpu_custom_call.1} parent=1 // pred_check_branch
      %93 = sbr.rel (0) target = $region37
    $region36: #{tpu_custom_call.1} parent=1 // pred_region
      _
    $region37: #{tpu_custom_call.1} parent=1 // pred_fallthru
      _
    // Predicated region
    $region38: #{tpu_custom_call.1} parent=1 // pred_check
      _
    $region39: #{tpu_custom_call.1} parent=1 // pred_check_branch
      %95 = sbr.rel (0) target = $region41
    $region40: #{tpu_custom_call.1} parent=1 // pred_region
      %97 = dma.done [#allocation3], 256
    $region41: #{tpu_custom_call.1} parent=1 // pred_fallthru
      _
    // Predicated region
    $region42: #{tpu_custom_call.1} parent=1 // pred_check
      _
    $region43: #{tpu_custom_call.1} parent=1 // pred_check_branch
      %99 = sbr.rel (0) target = $region45
    $region44: #{tpu_custom_call.1} parent=1 // pred_region
      %101 = dma.done [#allocation6], 256
    $region45: #{tpu_custom_call.1} parent=1 // pred_fallthru
      _
    // Predicated region
    $region46: #{tpu_custom_call.1} parent=1 // pred_check
      _
    $region47: #{tpu_custom_call.1} parent=1 // pred_check_branch
      %103 = sbr.rel (0) target = $region49
    $region48: #{tpu_custom_call.1} parent=1 // pred_region
      %105 = dma.done [#allocation6], 512
    $region49: #{tpu_custom_call.1} parent=1 // pred_fallthru
      _
    // Predicated region
    $region50: #{tpu_custom_call.1} parent=1 // pred_check
      _
    $region51: #{tpu_custom_call.1} parent=1 // pred_check_branch
      %107 = sbr.rel (0) target = $region53
    $region52: #{tpu_custom_call.1} parent=1 // pred_region
      %109 = dma.done [#allocation9], 512
    $region53: #{tpu_custom_call.1} parent=1 // pred_fallthru
      _
    // Predicated region
    $region54: #{tpu_custom_call.1} parent=1 // pred_check
      _
    $region55: #{tpu_custom_call.1} parent=1 // pred_check_branch
      %111 = sbr.rel (0) target = $region57
    $region56: #{tpu_custom_call.1} parent=1 // pred_region
      %113 = dma.done [#allocation9], 512
    $region57: #{tpu_custom_call.1} parent=1 // pred_fallthru
      _
    %v114 = vld [vmem:[#allocation2] sm:$0xff]
    %v115 = vld [vmem:[#allocation2 + $0x8] sm:$0xff]
    %v116 = vld [vmem:[#allocation5] sm:$0xff]
    %v117 = vld [vmem:[#allocation5 + $0x8] sm:$0xff]
    %v118 = vld [vmem:[#allocation7] sm:$0xff]
    %v119 = vld [vmem:[#allocation7 + $0x8] sm:$0xff]
    %v120 = vld [vmem:[#allocation7 + $0x10] sm:$0xff]
    %v121 = vld [vmem:[#allocation7 + $0x18] sm:$0xff]
    %v122 = vld [vmem:[#allocation8] sm:$0xff]
    %v123 = vld [vmem:[#allocation8 + $0x8] sm:$0xff]
    %v124 = vld [vmem:[#allocation8 + $0x10] sm:$0xff]
    %v125 = vld [vmem:[#allocation8 + $0x18] sm:$0xff]
    %vm126 = vcmask 261120
    %v128 = vsel %vm126, %v116, 0
    %v131 = vsel %vm126, %v117, 0
    %133 = vmatpush.msra.mxu0 0.0
    %134 = vmatpush.msra.mxu0 0.0
    %135 = vmatpush.msra.mxu0 0.0
    %136 = vmatpush.msra.mxu0 0.0
    %137 = vmatpush.msra.mxu0 0.0
    %138 = vmatpush.msra.mxu0 0.0
    %139 = vmatpush.msra.mxu0 0.0
    %140 = vmatpush.msra.mxu0 0.0
    %141 = vmatpush.msra.mxu0 0.0
    %142 = vmatpush.msra.mxu0 0.0
    %143 = vmatpush.msra.mxu0 0.0
    %144 = vmatpush.msra.mxu0 0.0
    %145 = vmatpush.msra.mxu0 %v125
    %146 = vmatpush.msra.mxu0 %v124
    %147 = vmatpush.msra.mxu0 %v123
    %148 = vmatpush.msra.mxu0 %v122
    %149 = vmatmul.f32.gmra.mxu0 %v128
    %v150 = vpop.f32.mrf.mxu0
    %v151 = vadd.f32 0.0, %v150
    %152 = vmatmul.f32.gmra.mxu0 %v131
    %v153 = vpop.f32.mrf.mxu0
    %v154 = vadd.f32 0.0, %v153
    %155 = vdwg.mxu0
    %v157 = vsel %vm126, %v114, 0
    %v160 = vsel %vm126, %v115, 0
    %162 = vmatpush.msra.mxu0 0.0
    %163 = vmatpush.msra.mxu0 0.0
    %164 = vmatpush.msra.mxu0 0.0
    %165 = vmatpush.msra.mxu0 0.0
    %166 = vmatpush.msra.mxu0 0.0
    %167 = vmatpush.msra.mxu0 0.0
    %168 = vmatpush.msra.mxu0 0.0
    %169 = vmatpush.msra.mxu0 0.0
    %170 = vmatpush.msra.mxu0 0.0
    %171 = vmatpush.msra.mxu0 0.0
    %172 = vmatpush.msra.mxu0 0.0
    %173 = vmatpush.msra.mxu0 0.0
    %174 = vmatpush.msra.mxu0 %v121
    %175 = vmatpush.msra.mxu0 %v120
    %176 = vmatpush.msra.mxu0 %v119
    %177 = vmatpush.msra.mxu0 %v118
    %178 = vmatmul.f32.gmra.mxu0 %v157
    %v179 = vpop.f32.mrf.mxu0
    %v180 = vadd.f32 %v151, %v179
    %181 = vmatmul.f32.gmra.mxu0 %v160
    %v182 = vpop.f32.mrf.mxu0
    %v183 = vadd.f32 %v154, %v182
    %184 = vdwg.mxu0
    %v185 = vld [vmem:[%s4] sm:$0x1]
    %v187 = vperm.slane %v185, 0
    %v189 = vadd.f32 %v180, %v187
    %v190 = vadd.f32 %v183, %v187
    %193 = vrot.lane.b32.xlu0 %v189, 96
    %v194 = vpop.permute.xlu0 %193
    %195 = vrot.lane.b32.xlu0 %v190, 96
    %v196 = vpop.permute.xlu0 %195
    %v199 = vsel %vm126, %v194, 0.0
    %200 = vadd.xlane.f32.xlu0 %v199
    %v201 = vpop.xlane.xlu0 %200
    %v202 = vsel %vm126, %v196, 0.0
    %203 = vadd.xlane.f32.xlu0 %v202
    %v204 = vpop.xlane.xlu0 %203
    %v205 = vrcp.pop 32.0
    %v206 = vmul.f32 32.0, %v205
    %v207 = vsub.f32 1.0, %v206
    %v208 = vmul.f32 %v205, %v207
    %v209 = vadd.f32 %v205, %v208
    %vm210 = vweird.f32 %v205
    %v211 = vsel %vm210, %v205, %v209
    %v212 = vmul.f32 %v201, %v211
    %v213 = vmul.f32 %v204, %v211
    %v214 = vsub.f32 %v189, %v212
    %v215 = vsub.f32 %v190, %v213
    %v216 = vmul.f32 %v214, %v214
    %v217 = vmul.f32 %v215, %v215
    %220 = vrot.lane.b32.xlu0 %v216, 96
    %v221 = vpop.permute.xlu0 %220
    %222 = vrot.lane.b32.xlu0 %v217, 96
    %v223 = vpop.permute.xlu0 %222
    %v226 = vsel %vm126, %v221, 0.0
    %227 = vadd.xlane.f32.xlu0 %v226
    %v228 = vpop.xlane.xlu0 %227
    %v229 = vsel %vm126, %v223, 0.0
    %230 = vadd.xlane.f32.xlu0 %v229
    %v231 = vpop.xlane.xlu0 %230
    %v232 = vmul.f32 %v228, %v211
    %v233 = vmul.f32 %v231, %v211
    %v234 = vadd.f32 %v232, 1e-05
    %v235 = vadd.f32 %v233, 1e-05
    %v236 = vrsqrt.pop %v234
    %v237 = vmul.f32 %v236, %v234
    %v238 = vmul.f32 %v237, %v236
    %v239 = vmul.f32 0.5, %v238
    %v240 = vsub.f32 1.5, %v239
    %v241 = vmul.f32 %v236, %v240
    %vm242 = vweird.f32 %v234
    %vm243 = vweird.f32 %v236
    %vm244 = vmor %vm242, %vm243
    %v245 = vsel %vm244, %v236, %v241
    %v246 = vrsqrt.pop %v235
    %v247 = vmul.f32 %v246, %v235
    %v248 = vmul.f32 %v247, %v246
    %v249 = vmul.f32 0.5, %v248
    %v250 = vsub.f32 1.5, %v249
    %v251 = vmul.f32 %v246, %v250
    %vm252 = vweird.f32 %v235
    %vm253 = vweird.f32 %v246
    %vm254 = vmor %vm252, %vm253
    %v255 = vsel %vm254, %v246, %v251
    %v256 = vmul.f32 %v214, %v245
    %v257 = vmul.f32 %v215, %v255
    %v258 = vld [vmem:[%s5] sm:$0x1]
    %v260 = vperm.slane %v258, 0
    %261 = vrot.lane.b32.xlu0 %v260, 32
    %v262 = vpop.permute.xlu0 %261
    %v264 = vmul.f32 %v256, %v262
    %v265 = vmul.f32 %v257, %v262
    %v266 = vld [vmem:[%s6] sm:$0x1]
    %v268 = vperm.slane %v266, 0
    %269 = vrot.lane.b32.xlu0 %v268, 32
    %v270 = vpop.permute.xlu0 %269
    %v272 = vadd.f32 %v264, %v270
    %v273 = vadd.f32 %v265, %v270
    %v274 = vmul.f32 %v272, 0.5
    %v275 = vmul.f32 %v273, 0.5
    %v276 = vmul.f32 %v272, 0.70710677
    %v277 = vmul.f32 %v273, 0.70710677
    %v278 = vmul.f32 %v276, %v276
    %v279 = vmin.f32 16.0, %v278
    %v280 = vmul.f32 %v279, 2.1237322e-06
    %v281 = vadd.f32 %v280, 0.00028619796
    %v282 = vmul.f32 %v279, %v281
    %v283 = vadd.f32 %v282, 0.0036580483
    %v284 = vmul.f32 %v279, %v283
    %v285 = vadd.f32 %v284, 0.05243302
    %v286 = vmul.f32 %v279, %v285
    %v287 = vadd.f32 %v286, 0.18741608
    %v288 = vmul.f32 %v279, %v287
    %v289 = vadd.f32 %v288, 1.1283791
    %v290 = vmul.f32 %v276, %v289
    %v291 = vmul.f32 %v279, 3.8918573e-05
    %v292 = vadd.f32 %v291, 0.001143296
    %v293 = vmul.f32 %v279, %v292
    %v294 = vadd.f32 %v293, 0.014752088
    %v295 = vmul.f32 %v279, %v294
    %v296 = vadd.f32 %v295, 0.112945676
    %v297 = vmul.f32 %v279, %v296
    %v298 = vadd.f32 %v297, 0.4994258
    %v299 = vmul.f32 %v279, %v298
    %v300 = vadd.f32 %v299, 1.0
    %v301 = vrcp.pop %v300
    %v302 = vmul.f32 %v300, %v301
    %v303 = vsub.f32 1.0, %v302
    %v304 = vmul.f32 %v301, %v303
    %v305 = vadd.f32 %v301, %v304
    %vm306 = vweird.f32 %v300
    %vm307 = vweird.f32 %v301
    %vm308 = vmor %vm306, %vm307
    %v309 = vsel %vm308, %v301, %v305
    %v310 = vand.u32 2147483647, %v300
    %vm311 = vcmp.eq.f32.partialorder %v310, 8.507059e+37
    %v312 = vand.u32 %v300, 2147483648
    %v313 = vor.u32 1.1754944e-38, %v312
    %v314 = vsel %vm311, %v313, %v309
    %v315 = vmul.f32 %v290, %v314
    %v316 = vmin.f32 %v315, 1.0
    %v317 = vmax.f32 %v316, -1.0
    %v318 = vmul.f32 %v277, %v277
    %v319 = vmin.f32 16.0, %v318
    %v320 = vmul.f32 %v319, 2.1237322e-06
    %v321 = vadd.f32 %v320, 0.00028619796
    %v322 = vmul.f32 %v319, %v321
    %v323 = vadd.f32 %v322, 0.0036580483
    %v324 = vmul.f32 %v319, %v323
    %v325 = vadd.f32 %v324, 0.05243302
    %v326 = vmul.f32 %v319, %v325
    %v327 = vadd.f32 %v326, 0.18741608
    %v328 = vmul.f32 %v319, %v327
    %v329 = vadd.f32 %v328, 1.1283791
    %v330 = vmul.f32 %v277, %v329
    %v331 = vmul.f32 %v319, 3.8918573e-05
    %v332 = vadd.f32 %v331, 0.001143296
    %v333 = vmul.f32 %v319, %v332
    %v334 = vadd.f32 %v333, 0.014752088
    %v335 = vmul.f32 %v319, %v334
    %v336 = vadd.f32 %v335, 0.112945676
    %v337 = vmul.f32 %v319, %v336
    %v338 = vadd.f32 %v337, 0.4994258
    %v339 = vmul.f32 %v319, %v338
    %v340 = vadd.f32 %v339, 1.0
    %v341 = vrcp.pop %v340
    %v342 = vmul.f32 %v340, %v341
    %v343 = vsub.f32 1.0, %v342
    %v344 = vmul.f32 %v341, %v343
    %v345 = vadd.f32 %v341, %v344
    %vm346 = vweird.f32 %v340
    %vm347 = vweird.f32 %v341
    %vm348 = vmor %vm346, %vm347
    %v349 = vsel %vm348, %v341, %v345
    %v350 = vand.u32 2147483647, %v340
    %vm351 = vcmp.eq.f32.partialorder %v350, 8.507059e+37
    %v352 = vand.u32 %v340, 2147483648
    %v353 = vor.u32 1.1754944e-38, %v352
    %v354 = vsel %vm351, %v353, %v349
    %v355 = vmul.f32 %v330, %v354
    %v356 = vmin.f32 %v355, 1.0
    %v357 = vmax.f32 %v356, -1.0
    %v358 = vadd.f32 %v317, 1.0
    %v359 = vadd.f32 %v357, 1.0
    %v360 = vmul.f32 %v274, %v358
    %v361 = vmul.f32 %v275, %v359
    %v362 = vld [vmem:[#allocation10] sm:$0xff]
    %v363 = vld [vmem:[#allocation10 + $0x8] sm:$0xff]
    %v364 = vld [vmem:[#allocation10 + $0x10] sm:$0xff]
    %v365 = vld [vmem:[#allocation10 + $0x18] sm:$0xff]
    %v366 = vld [vmem:[%s8] sm:$0x1]
    %v368 = vperm.slane %v366, 0
    %372 = vrot.lane.b32.xlu0 %v360, 96
    %v373 = vpop.permute.xlu0 %372
    %374 = vrot.lane.b32.xlu0 %v361, 96
    %v375 = vpop.permute.xlu0 %374
    %v376 = vsel %vm126, %v373, 0
    %v378 = vsel %vm126, %v375, 0
    %380 = vmatpush.msra.mxu0 0.0
    %381 = vmatpush.msra.mxu0 0.0
    %382 = vmatpush.msra.mxu0 0.0
    %383 = vmatpush.msra.mxu0 0.0
    %384 = vmatpush.msra.mxu0 0.0
    %385 = vmatpush.msra.mxu0 0.0
    %386 = vmatpush.msra.mxu0 0.0
    %387 = vmatpush.msra.mxu0 0.0
    %388 = vmatpush.msra.mxu0 0.0
    %389 = vmatpush.msra.mxu0 0.0
    %390 = vmatpush.msra.mxu0 0.0
    %391 = vmatpush.msra.mxu0 0.0
    %392 = vmatpush.msra.mxu0 %v365
    %393 = vmatpush.msra.mxu0 %v364
    %394 = vmatpush.msra.mxu0 %v363
    %395 = vmatpush.msra.mxu0 %v362
    %396 = vmatmul.f32.gmra.mxu0 %v376
    %v397 = vpop.f32.mrf.mxu0
    %v398 = vadd.f32 %v368, %v397
    %399 = vmatmul.f32.gmra.mxu0 %v378
    %v400 = vpop.f32.mrf.mxu0
    %v401 = vadd.f32 %v368, %v400
    %402 = vdwg.mxu0
    %v403 = vmul.f32 %v189, %v398
    %v404 = vmul.f32 %v190, %v401
    %v405 = vadd.f32 %v116, %v403
    %v406 = vadd.f32 %v117, %v404
    %407 = vst.msk [vmem:[#allocation11] sm:$0xff] %vm126, %v405
    %408 = vst.msk [vmem:[#allocation11 + $0x8] sm:$0xff] %vm126, %v406
    %409 = vst.msk [vmem:[#allocation12] sm:$0xff] %vm126, %v189
    %410 = vst.msk [vmem:[#allocation12 + $0x8] sm:$0xff] %vm126, %v190
    // Predicated region
    $region58: #{tpu_custom_call.1} parent=1 // pred_check
      _
    $region59: #{tpu_custom_call.1} parent=1 // pred_check_branch
      %412 = sbr.rel (0) target = $region61
    $region60: #{tpu_custom_call.1} parent=1 // pred_region
      %414 = vsyncadd [#allocation4], 0
      %s415 = sshll.u32 [#allocation11], 4
      %s416 = int_to_ptr.vmem [resolvable:$true] %s415
      %s417 = sshll.u32 %s9, 4
      %s418 = int_to_ptr.hbm [resolvable:$true] %s417
      %423 = dma.vmem_to_hbm [thread:$0]  %s416, 256, %s418, [#allocation4], 128, 128, 8
    $region61: #{tpu_custom_call.1} parent=1 // pred_fallthru
      _
    // Predicated region
    $region62: #{tpu_custom_call.1} parent=1 // pred_check
      _
    $region63: #{tpu_custom_call.1} parent=1 // pred_check_branch
      %425 = sbr.rel (0) target = $region65
    $region64: #{tpu_custom_call.1} parent=1 // pred_region
      %427 = vsyncadd [#allocation13], 0
      %s428 = sshll.u32 [#allocation12], 4
      %s429 = int_to_ptr.vmem [resolvable:$true] %s428
      %s430 = sshll.u32 %s10, 4
      %s431 = int_to_ptr.hbm [resolvable:$true] %s430
      %436 = dma.vmem_to_hbm [thread:$0]  %s429, 256, %s431, [#allocation13], 128, 128, 8
    $region65: #{tpu_custom_call.1} parent=1 // pred_fallthru
      _
    // Predicated region
    $region66: #{tpu_custom_call.1} parent=1 // pred_check
      _
    $region67: #{tpu_custom_call.1} parent=1 // pred_check_branch
      %438 = sbr.rel (0) target = $region69
    $region68: #{tpu_custom_call.1} parent=1 // pred_region
      %440 = dma.done [#allocation4], 256
    $region69: #{tpu_custom_call.1} parent=1 // pred_fallthru
      _
    // Predicated region
    $region70: #{tpu_custom_call.1} parent=1 // pred_check
      _
    $region71: #{tpu_custom_call.1} parent=1 // pred_check_branch
      %442 = sbr.rel (0) target = $region73
    $region72: #{tpu_custom_call.1} parent=1 // pred_region
      %444 = dma.done [#allocation13], 256
    $region73: #{tpu_custom_call.1} parent=1 // pred_fallthru
      _
    %445 = vsyncpa [#allocation3], 1
    %446 = vsyncpa [#allocation6], 1
    %447 = vsyncpa [#allocation9], 1
    %448 = vsyncpa [#allocation4], 1
    %449 = vsyncpa [#allocation13], 1

</llo_original>
